<compile_context>
chip_gen: v6e
topology: v6e:2x2x1
jax: 0.10.0
libtpu: 0.0.40
codegen_flags: <defaults>
</compile_context>

<pallas_src>
import functools

import jax
import jax.numpy as jnp
from jax.experimental import pallas as pl
from jax.experimental.pallas import tpu as pltpu


def _lora_linear_kernel(x_ref, w_ref, b_ref, a_ref, bl_ref,
                        o_ref, acc_ref, xa_ref, *, scale):
    k = pl.program_id(2)

    @pl.when(k == 0)
    def _():
        acc_ref[...] = jnp.zeros_like(acc_ref)
        xa_ref[...] = jnp.zeros_like(xa_ref)

    x = x_ref[...]                                   # (tm, tk) bf16
    # Contract on K (dim 1 of both operands): weights stay in native (out, in)
    # layout -> no extra HBM transpose pass in the wrapper.
    dn = (((1,), (1,)), ((), ()))
    acc_ref[...] += jax.lax.dot_general(              # (tm, tn) += x @ W.T
        x, w_ref[...], dn, preferred_element_type=jnp.float32)
    xa_ref[...] += jax.lax.dot_general(               # (tm, r_pad) += x @ A.T
        x, a_ref[...], dn, preferred_element_type=jnp.float32)

    @pl.when(k == pl.num_programs(2) - 1)
    def _():
        # Scale the small (tm, r_pad) intermediate (~N/r fewer VPU multiplies
        # than scaling the (tm, tn) LoRA result), then project through B.T.
        xa = (xa_ref[...] * scale).astype(bl_ref.dtype)
        lora = jax.lax.dot_general(                   # (tm, tn) = xa @ B.T
            xa, bl_ref[...], dn, preferred_element_type=jnp.float32)
        o_ref[...] = (acc_ref[...] + b_ref[...] + lora).astype(o_ref.dtype)


def _round_up(v, m):
    return (v + m - 1) // m * m


def _pad_cast_2d(a, rows, cols, dtype):
    """Zero-pad a 2-D array to (rows, cols) and cast; no-op if already there."""
    if a.shape == (rows, cols) and a.dtype == dtype:
        return a
    out = jnp.zeros((rows, cols), dtype)
    return out.at[:a.shape[0], :a.shape[1]].set(a.astype(dtype))


def lora_linear(x, weight, bias, lora_A, lora_B, *, alpha=1,
                tm=256, tn=512, tk=512, compute_dtype=jnp.bfloat16):
    """
    x:       (M, K)   input
    weight:  (N, K)   frozen linear weight (PyTorch convention: out x in)
    bias:    (N,)     frozen linear bias
    lora_A:  (r, K)
    lora_B:  (N, r)
    returns  (M, N) = x @ W.T + b + (alpha / r) * (x @ A.T @ B.T)
    """
    M, K = x.shape
    N, K2 = weight.shape
    assert K2 == K, "weight must be (out_features, in_features)"
    r = lora_A.shape[0]
    scaling = float(alpha) / float(r)   # derived from actual LoRA rank

    out_dtype = x.dtype

    # Clamp tiles for small layers; keep (sublane, lane) = (8, 128) alignment.
    tm = max(8, min(tm, _round_up(M, 8)))
    tn = max(128, min(tn, _round_up(N, 128)))
    tk = max(128, min(tk, _round_up(K, 128)))
    RP = 128   # rank padded to a full lane width (r=4 would waste 31/32 of vregs)

    Mp, Np, Kp = _round_up(M, tm), _round_up(N, tn), _round_up(K, tk)

    # Zero-pad (exact: padded K/r columns contribute 0, padded M/N sliced off)
    # and cast MXU operands to bf16; bias stays f32.
    xp = _pad_cast_2d(x, Mp, Kp, compute_dtype)
    wp = _pad_cast_2d(weight, Np, Kp, compute_dtype)          # native (N, K)
    ap = _pad_cast_2d(lora_A, RP, Kp, compute_dtype)          # native (r, K)
    bp = _pad_cast_2d(lora_B, Np, RP, compute_dtype)          # native (N, r)
    biasp = _pad_cast_2d(bias.reshape(1, N), 1, Np, jnp.float32)

    grid = (Mp // tm, Np // tn, Kp // tk)

    # VMEM budget: double-buffered bf16 inputs + f32 accumulators + output.
    isz = jnp.dtype(compute_dtype).itemsize
    est_vmem = (2 * isz * (tm * tk + tn * tk + RP * tk + tn * RP)
                + 2 * 4 * tn
                + 4 * (tm * tn + tm * RP)
                + 2 * jnp.dtype(out_dtype).itemsize * tm * tn)
    vmem_limit = int(min(48 * 1024 * 1024, max(32 * 1024 * 1024, 2 * est_vmem)))

    kernel = functools.partial(_lora_linear_kernel, scale=scaling)

    out = pl.pallas_call(
        kernel,
        out_shape=jax.ShapeDtypeStruct((Mp, Np), out_dtype),
        grid_spec=pltpu.PrefetchScalarGridSpec(
            num_scalar_prefetch=0,
            grid=grid,
            in_specs=[
                pl.BlockSpec((tm, tk), lambda i, j, k: (i, k)),   # x
                pl.BlockSpec((tn, tk), lambda i, j, k: (j, k)),   # W  (N, K)
                pl.BlockSpec((1, tn), lambda i, j, k: (0, j)),    # bias
                pl.BlockSpec((RP, tk), lambda i, j, k: (0, k)),   # A  (r_pad, K)
                pl.BlockSpec((tn, RP), lambda i, j, k: (j, 0)),   # B  (N, r_pad)
            ],
            out_specs=pl.BlockSpec((tm, tn), lambda i, j, k: (i, j)),
            scratch_shapes=[
                pltpu.VMEM((tm, tn), jnp.float32),   # base accumulator
                pltpu.VMEM((tm, RP), jnp.float32),   # x @ A.T accumulator
            ],
        ),
        compiler_params=pltpu.CompilerParams(
            dimension_semantics=("parallel", "parallel", "arbitrary"),
            vmem_limit_bytes=vmem_limit,
        ),
    )(xp, wp, biasp, ap, bp)

    return out[:M, :N]


if __name__ == "__main__":
    # Small shapes consistent with LoRALinear wrapping nn.Linear(256, 256)
    # with rank=4, alpha=1.  Tiles chosen so the grid is (2, 2, 2), exercising
    # the k-accumulation and the finalize epilogue.
    M, K, N, R = 16, 256, 256, 4
    alpha = 1

    key = jax.random.PRNGKey(0)
    kx, kw, kb, ka, kB = jax.random.split(key, 5)

    x = jax.random.normal(kx, (M, K), dtype=jnp.float32)
    weight = jax.random.normal(kw, (N, K), dtype=jnp.float32) * 0.1   # frozen W
    bias = jax.random.normal(kb, (N,), dtype=jnp.float32) * 0.1       # frozen b
    # LoRA params (shapes from LoRALayer.__init__); nonzero B so the LoRA path
    # is actually exercised (the PyTorch init zeros B).
    lora_A = jax.random.uniform(ka, (R, K), dtype=jnp.float32,
                                minval=-1.0 / jnp.sqrt(K), maxval=1.0 / jnp.sqrt(K))
    lora_B = jax.random.normal(kB, (N, R), dtype=jnp.float32) * 0.05

    out = lora_linear(x, weight, bias, lora_A, lora_B, alpha=alpha,
                      tm=8, tn=128, tk=128)
    out = jax.block_until_ready(out)

    scaling = alpha / R
    # Full-precision reference (dropout = identity in eval mode).
    ref_f32 = x @ weight.T + bias + (x @ lora_A.T @ lora_B.T) * scaling
    # bf16-consistent reference (same operand rounding as the kernel's MXU path).
    xb = x.astype(jnp.bfloat16).astype(jnp.float32)
    wb = weight.astype(jnp.bfloat16).astype(jnp.float32)
    ab = lora_A.astype(jnp.bfloat16).astype(jnp.float32)
    bb = lora_B.astype(jnp.bfloat16).astype(jnp.float32)
    ref_bf16 = xb @ wb.T + bias + (xb @ ab.T @ bb.T) * scaling

    assert out.shape == (M, N)
    assert jnp.allclose(out, ref_bf16, atol=1e-2, rtol=1e-2), \
        "mismatch vs bf16-consistent reference"
    assert jnp.allclose(out, ref_f32, atol=5e-2, rtol=5e-2), \
        "mismatch vs f32 reference"
    print("KERNEL_OK")
</pallas_src>

<mosaic_0001>
module attributes {stable_mosaic.version = 11 : i64} {
  func.func @_lora_linear_kernel(%arg0: i32, %arg1: i32, %arg2: i32, %arg3: memref<8x128xbf16, #tpu.memory_space<vmem>>, %arg4: memref<128x128xbf16, #tpu.memory_space<vmem>>, %arg5: memref<1x128xf32, #tpu.memory_space<vmem>>, %arg6: memref<128x128xbf16, #tpu.memory_space<vmem>>, %arg7: memref<128x128xbf16, #tpu.memory_space<vmem>>, %arg8: memref<8x128xf32, #tpu.memory_space<vmem>>, %arg9: memref<8x128xf32, #tpu.memory_space<vmem>>, %arg10: memref<8x128xf32, #tpu.memory_space<vmem>>) attributes {dimension_semantics = [#tpu.dimension_semantics<parallel>, #tpu.dimension_semantics<parallel>, #tpu.dimension_semantics<arbitrary>], iteration_bounds = array<i64: 2, 2, 2>, scalar_prefetch = 0 : i64, scratch_operands = 2 : i64, tpu.core_type = #tpu.core_type<tc>, window_params = [{transform_indices = @transform_0, window_bounds = array<i64: 8, 128>}, {transform_indices = @transform_1, window_bounds = array<i64: 128, 128>}, {transform_indices = @transform_2, window_bounds = array<i64: 1, 128>}, {transform_indices = @transform_3, window_bounds = array<i64: 128, 128>}, {transform_indices = @transform_4, window_bounds = array<i64: 128, 128>}, {transform_indices = @transform_5, window_bounds = array<i64: 8, 128>}]} {
    %c0_i32 = arith.constant 0 : i32
    %0 = arith.cmpi eq, %arg2, %c0_i32 : i32
    %1 = arith.extui %0 : i1 to i32
    %c0_i32_0 = arith.constant 0 : i32
    %2 = arith.cmpi ne, %1, %c0_i32_0 : i32
    scf.if %2 {
      %cst_16 = arith.constant 0.000000e+00 : f32
      %17 = vector.broadcast %cst_16 : f32 to vector<8x128xf32>
      %c0_17 = arith.constant 0 : index
      %c0_18 = arith.constant 0 : index
      %18 = vector.load %arg9[%c0_17, %c0_18] : memref<8x128xf32, #tpu.memory_space<vmem>>, vector<8x128xf32>
      tpu.vector_store %arg9[%c0_17, %c0_18], %17 {strides = array<i32>} : memref<8x128xf32, #tpu.memory_space<vmem>>, vector<8x128xf32>,
      %cst_19 = arith.constant 0.000000e+00 : f32
      %19 = vector.broadcast %cst_19 : f32 to vector<8x128xf32>
      %c0_20 = arith.constant 0 : index
      %c0_21 = arith.constant 0 : index
      %20 = vector.load %arg10[%c0_20, %c0_21] : memref<8x128xf32, #tpu.memory_space<vmem>>, vector<8x128xf32>
      tpu.vector_store %arg10[%c0_20, %c0_21], %19 {strides = array<i32>} : memref<8x128xf32, #tpu.memory_space<vmem>>, vector<8x128xf32>,
    } else {
    }
    %c0 = arith.constant 0 : index
    %c0_1 = arith.constant 0 : index
    %3 = vector.load %arg3[%c0, %c0_1] : memref<8x128xbf16, #tpu.memory_space<vmem>>, vector<8x128xbf16>
    %c0_2 = arith.constant 0 : index
    %c0_3 = arith.constant 0 : index
    %4 = vector.load %arg9[%c0_2, %c0_3] : memref<8x128xf32, #tpu.memory_space<vmem>>, vector<8x128xf32>
    %c0_4 = arith.constant 0 : index
    %c0_5 = arith.constant 0 : index
    %5 = vector.load %arg4[%c0_4, %c0_5] : memref<128x128xbf16, #tpu.memory_space<vmem>>, vector<128x128xbf16>
    %cst = arith.constant dense<0.000000e+00> : vector<8x128xf32>
    %6 = tpu.matmul %3, %5, %cst {dimension_numbers = #tpu.dot_dimension_numbers<[1], [1], [0], [0], [0, 0, 1, 0], [], []>} : vector<8x128xbf16>, vector<128x128xbf16>, vector<8x128xf32> -> vector<8x128xf32>
    %7 = arith.addf %4, %6 : vector<8x128xf32>
    %c0_6 = arith.constant 0 : index
    %c0_7 = arith.constant 0 : index
    %8 = vector.load %arg9[%c0_6, %c0_7] : memref<8x128xf32, #tpu.memory_space<vmem>>, vector<8x128xf32>
    tpu.vector_store %arg9[%c0_6, %c0_7], %7 {strides = array<i32>} : memref<8x128xf32, #tpu.memory_space<vmem>>, vector<8x128xf32>,
    %c0_8 = arith.constant 0 : index
    %c0_9 = arith.constant 0 : index
    %9 = vector.load %arg10[%c0_8, %c0_9] : memref<8x128xf32, #tpu.memory_space<vmem>>, vector<8x128xf32>
    %c0_10 = arith.constant 0 : index
    %c0_11 = arith.constant 0 : index
    %10 = vector.load %arg6[%c0_10, %c0_11] : memref<128x128xbf16, #tpu.memory_space<vmem>>, vector<128x128xbf16>
    %cst_12 = arith.constant dense<0.000000e+00> : vector<8x128xf32>
    %11 = tpu.matmul %3, %10, %cst_12 {dimension_numbers = #tpu.dot_dimension_numbers<[1], [1], [0], [0], [0, 0, 1, 0], [], []>} : vector<8x128xbf16>, vector<128x128xbf16>, vector<8x128xf32> -> vector<8x128xf32>
    %12 = arith.addf %9, %11 : vector<8x128xf32>
    %c0_13 = arith.constant 0 : index
    %c0_14 = arith.constant 0 : index
    %13 = vector.load %arg10[%c0_13, %c0_14] : memref<8x128xf32, #tpu.memory_space<vmem>>, vector<8x128xf32>
    tpu.vector_store %arg10[%c0_13, %c0_14], %12 {strides = array<i32>} : memref<8x128xf32, #tpu.memory_space<vmem>>, vector<8x128xf32>,
    %c1_i32 = arith.constant 1 : i32
    %14 = arith.cmpi eq, %arg2, %c1_i32 : i32
    %15 = arith.extui %14 : i1 to i32
    %c0_i32_15 = arith.constant 0 : i32
    %16 = arith.cmpi ne, %15, %c0_i32_15 : i32
    scf.if %16 {
      %c0_16 = arith.constant 0 : index
      %c0_17 = arith.constant 0 : index
      %17 = vector.load %arg10[%c0_16, %c0_17] : memref<8x128xf32, #tpu.memory_space<vmem>>, vector<8x128xf32>
      %cst_18 = arith.constant 2.500000e-01 : f32
      %18 = vector.broadcast %cst_18 : f32 to vector<8x128xf32>
      %19 = arith.mulf %17, %18 : vector<8x128xf32>
      %20 = arith.truncf %19 : vector<8x128xf32> to vector<8x128xbf16>
      %c0_19 = arith.constant 0 : index
      %c0_20 = arith.constant 0 : index
      %21 = vector.load %arg7[%c0_19, %c0_20] : memref<128x128xbf16, #tpu.memory_space<vmem>>, vector<128x128xbf16>
      %cst_21 = arith.constant dense<0.000000e+00> : vector<8x128xf32>
      %22 = tpu.matmul %20, %21, %cst_21 {dimension_numbers = #tpu.dot_dimension_numbers<[1], [1], [0], [0], [0, 0, 1, 0], [], []>} : vector<8x128xbf16>, vector<128x128xbf16>, vector<8x128xf32> -> vector<8x128xf32>
      %c0_22 = arith.constant 0 : index
      %c0_23 = arith.constant 0 : index
      %23 = vector.load %arg9[%c0_22, %c0_23] : memref<8x128xf32, #tpu.memory_space<vmem>>, vector<8x128xf32>
      %c0_24 = arith.constant 0 : index
      %c0_25 = arith.constant 0 : index
      %24 = vector.load %arg5[%c0_24, %c0_25] : memref<1x128xf32, #tpu.memory_space<vmem>>, vector<1x128xf32>
      %25 = vector.broadcast %24 : vector<1x128xf32> to vector<8x128xf32>
      %26 = arith.addf %23, %25 : vector<8x128xf32>
      %27 = arith.addf %26, %22 : vector<8x128xf32>
      %c0_26 = arith.constant 0 : index
      %c0_27 = arith.constant 0 : index
      %28 = vector.load %arg8[%c0_26, %c0_27] : memref<8x128xf32, #tpu.memory_space<vmem>>, vector<8x128xf32>
      tpu.vector_store %arg8[%c0_26, %c0_27], %27 {strides = array<i32>} : memref<8x128xf32, #tpu.memory_space<vmem>>, vector<8x128xf32>,
    } else {
    }
    return
  }
  func.func @transform_0(%arg0: i32, %arg1: i32, %arg2: i32) -> (i32, i32) {
    %c0_i32 = arith.constant 0 : i32
    return %arg0, %arg2 : i32, i32
  }
  func.func @transform_1(%arg0: i32, %arg1: i32, %arg2: i32) -> (i32, i32) {
    %c0_i32 = arith.constant 0 : i32
    return %arg1, %arg2 : i32, i32
  }
  func.func @transform_2(%arg0: i32, %arg1: i32, %arg2: i32) -> (i32, i32) {
    %c0_i32 = arith.constant 0 : i32
    %c0_i32_0 = arith.constant 0 : i32
    return %c0_i32, %arg1 : i32, i32
  }
  func.func @transform_3(%arg0: i32, %arg1: i32, %arg2: i32) -> (i32, i32) {
    %c0_i32 = arith.constant 0 : i32
    %c0_i32_0 = arith.constant 0 : i32
    return %c0_i32, %arg2 : i32, i32
  }
  func.func @transform_4(%arg0: i32, %arg1: i32, %arg2: i32) -> (i32, i32) {
    %c0_i32 = arith.constant 0 : i32
    %c0_i32_0 = arith.constant 0 : i32
    return %arg1, %c0_i32 : i32, i32
  }
  func.func @transform_5(%arg0: i32, %arg1: i32, %arg2: i32) -> (i32, i32) {
    %c0_i32 = arith.constant 0 : i32
    return %arg0, %arg1 : i32, i32
  }
}

</mosaic_0001>

<llo_original>
// kernel: tpu_custom_call.1
$region0: #{tpu_custom_call.1}
  #allocation0 [shape = 'u32[]', space=smem, size = 0x4, offset = 0x4, fixed_abs, tag = 'smem constant byte address 0x4 - core index']
  #allocation1 [shape = 'u32[144,128]{1,0:T(1,128)}', space=vmem, size = 0x12000, scoped, tag = 'internal scratch']
  #allocation2 [shape = 'f32[8,128]{1,0:T(8,128)}', space=vmem, size = 0x1000, scoped, tag = 'scratch operand']
  #allocation3 [shape = 'f32[8,128]{1,0:T(8,128)}', space=vmem, size = 0x1000, scoped, tag = 'scratch operand']
  %s0 = inlined_call_operand.hbm [shape: bf16[16,256], index: 0, kind: input, shape index: {}]
  %s1 = inlined_call_operand.hbm [shape: bf16[256,256], index: 1, kind: input, shape index: {}]
  %s2 = inlined_call_operand.vmem [shape: f32[1,256], index: 2, kind: input, shape index: {}]
  %s3 = inlined_call_operand.hbm [shape: bf16[128,256], index: 3, kind: input, shape index: {}]
  %s4 = inlined_call_operand.hbm [shape: bf16[256,128], index: 4, kind: input, shape index: {}]
  %s5 = inlined_call_operand.hbm [shape: f32[16,256], index: 5, kind: output, shape index: {}]
  %s6 = sld [smem:[#allocation0]]
  $region77: #{tpu_custom_call.1} parent=0
    _
  %s8 = ssub.s32 1, %s6
  %s9 = scalar_select 0, %s8, %s6
  $region1: #{tpu_custom_call.1} parent=0
    #allocation4 [shape = 'u8[4096]{0}', space=vmem, size = 0x1000, scoped, tag = 'input window, operand 0']
    #allocation5 [shape = 's32[2]{0}', space=sflag, size = 0x8, scoped, tag = 'scoped memory for tpu_custom_call.1']
    #allocation6 [shape = 's32[2]{0}', space=sflag, size = 0x8, scoped, tag = 'scoped memory for tpu_custom_call.1']
    #allocation7 [shape = 'u8[65536]{0}', space=vmem, size = 0x10000, scoped, tag = 'input window, operand 1']
    #allocation8 [shape = 's32[2]{0}', space=sflag, size = 0x8, scoped, tag = 'scoped memory for tpu_custom_call.1']
    #allocation9 [shape = 'u8[65536]{0}', space=vmem, size = 0x10000, scoped, tag = 'input window, operand 3']
    #allocation10 [shape = 'u8[65536]{0}', space=vmem, size = 0x10000, scoped, tag = 'input window, operand 4']
    #allocation11 [shape = 's32[2]{0}', space=sflag, size = 0x8, scoped, tag = 'scoped memory for tpu_custom_call.1']
    #allocation12 [shape = 'u8[8192]{0}', space=vmem, size = 0x2000, scoped, tag = 'output window, operand 0']
    %10 = vsyncpa [#allocation5], 0
    %s11 = scalar_lea.sflag [#allocation5], 1
    %12 = vsyncpa %s11, 0
    %13 = vsyncpa [#allocation8], 0
    %s14 = scalar_lea.sflag [#allocation8], 1
    %15 = vsyncpa %s14, 0
    %16 = vsyncpa [#allocation11], 0
    %s17 = scalar_lea.sflag [#allocation11], 1
    %18 = vsyncpa %s17, 0
    %19 = vsyncpa [#allocation6], 0
    %s20 = scalar_lea.sflag [#allocation6], 1
    %21 = vsyncpa %s20, 0
    loop: start=0, step=1, limit=10
    $region2: #{tpu_custom_call.1} parent=1 // loop_pre_header
      _
    $region3: #{tpu_custom_call.1} parent=1 // loop_header
      %s23 = sphi 0, %s27
      %p24 = scmp.ge.s32.totalorder %s23, 10
      %s30 = sphi 0, %s49
      %s31 = sphi 0, %s45
      %s32 = sphi 0, %s41
      %s33 = sphi 0, %s30
      %s34 = sphi 0, %s31
      %s35 = sphi 0, %s32
      %s36 = sphi 0, %s33
      %s37 = sphi 0, %s34
      %s38 = sphi 0, %s35
      %s54 = sphi 0, %s56
      %s57 = sphi 0, %s54
      %s58 = sphi 0, %s57
      %s74 = sphi 0, %s58
      %s82 = sphi 0, %s84
      %s85 = sphi 0, %s82
      %s86 = sphi 0, %s85
      %s102 = sphi 0, %s86
      %s108 = sphi 0, %s110
      %s111 = sphi 0, %s108
      %s112 = sphi 0, %s111
      %s128 = sphi 0, %s112
      %s134 = sphi 0, %s136
      %s137 = sphi 0, %s134
      %s138 = sphi 0, %s137
      %s154 = sphi 0, %s138
      %s160 = sphi 0, %s162
      %s163 = sphi 0, %s160
      %s164 = sphi 0, %s163
      %s180 = sphi 0, %s164
      %s188 = sphi 0, %s190
      %s191 = sphi 0, %s188
      %s192 = sphi 0, %s191
      %s208 = sphi 0, %s192
    $region4: #{tpu_custom_call.1} parent=1 // loop_header_branch
      %26 = sbr.rel (%p24) target = $region8
    $region5: #{tpu_custom_call.1} parent=1 // loop_body
      %s28 = ssub.s32 %s23, 1
      %s29 = ssub.s32 %s23, 2
      %s39 = sadd.s32 1, %s32
      %p40 = scmp.ge.s32.totalorder %s39, 2
      %s41 = scalar_select %p40, 0, %s39
      %s42 = sadd.s32 1, %s31
      %s43 = scalar_select %p40, %s42, %s31
      %p44 = scmp.ge.s32.totalorder %s43, 2
      %s45 = scalar_select %p44, 0, %s43
      %s46 = sadd.s32 1, %s30
      %s47 = scalar_select %p44, %s46, %s30
      %p48 = scmp.ge.s32.totalorder %s47, 2
      %s49 = scalar_select %p48, 0, %s47
      %s50 = ssub.s32 %s30, %s49
      %s51 = ssub.s32 %s32, %s41
      %s52 = sor.u32 %s50, %s51
      %p53 = scmp.eq.s32.totalorder %s52, 0
      %s55 = sadd.s32 %s54, 1
      %s56 = scalar_select %p53, %s54, %s55
      %p59 = pneg %p53
      %p60 = scmp.eq.s32.totalorder %s23, 7
      %p61 = por %p59, %p60
      %p62 = scmp.ne.s32.totalorder %s54, %s57
      %p63 = scmp.eq.s32.totalorder %s23, 0
      %p64 = por %p62, %p63
      %p65 = scmp.ne.s32.totalorder %s54, %s57
      %p66 = scmp.eq.s32.totalorder %s28, 7
      %p67 = por %p65, %p66
      %p68 = scmp.ne.s32.totalorder %s57, %s58
      %p69 = scmp.eq.s32.totalorder %s28, 0
      %p70 = por %p68, %p69
      %p71 = scmp.ne.s32.totalorder %s57, %s58
      %p72 = scmp.eq.s32.totalorder %s29, 7
      %p73 = por %p71, %p72
      %p75 = scmp.ne.s32.totalorder %s58, %s74
      %p76 = scmp.eq.s32.totalorder %s29, 0
      %p77 = por %p75, %p76
      %s78 = ssub.s32 %s31, %s45
      %s79 = ssub.s32 %s32, %s41
      %s80 = sor.u32 %s78, %s79
      %p81 = scmp.eq.s32.totalorder %s80, 0
      %s83 = sadd.s32 %s82, 1
      %s84 = scalar_select %p81, %s82, %s83
      %p87 = pneg %p81
      %p88 = scmp.eq.s32.totalorder %s23, 7
      %p89 = por %p87, %p88
      %p90 = scmp.ne.s32.totalorder %s82, %s85
      %p91 = scmp.eq.s32.totalorder %s23, 0
      %p92 = por %p90, %p91
      %p93 = scmp.ne.s32.totalorder %s82, %s85
      %p94 = scmp.eq.s32.totalorder %s28, 7
      %p95 = por %p93, %p94
      %p96 = scmp.ne.s32.totalorder %s85, %s86
      %p97 = scmp.eq.s32.totalorder %s28, 0
      %p98 = por %p96, %p97
      %p99 = scmp.ne.s32.totalorder %s85, %s86
      %p100 = scmp.eq.s32.totalorder %s29, 7
      %p101 = por %p99, %p100
      %p103 = scmp.ne.s32.totalorder %s86, %s102
      %p104 = scmp.eq.s32.totalorder %s29, 0
      %p105 = por %p103, %p104
      %s106 = ssub.s32 %s31, %s45
      %p107 = scmp.eq.s32.totalorder %s106, 0
      %s109 = sadd.s32 %s108, 1
      %s110 = scalar_select %p107, %s108, %s109
      %p113 = pneg %p107
      %p114 = scmp.eq.s32.totalorder %s23, 7
      %p115 = por %p113, %p114
      %p116 = scmp.ne.s32.totalorder %s108, %s111
      %p117 = scmp.eq.s32.totalorder %s23, 0
      %p118 = por %p116, %p117
      %p119 = scmp.ne.s32.totalorder %s108, %s111
      %p120 = scmp.eq.s32.totalorder %s28, 7
      %p121 = por %p119, %p120
      %p122 = scmp.ne.s32.totalorder %s111, %s112
      %p123 = scmp.eq.s32.totalorder %s28, 0
      %p124 = por %p122, %p123
      %p125 = scmp.ne.s32.totalorder %s111, %s112
      %p126 = scmp.eq.s32.totalorder %s29, 7
      %p127 = por %p125, %p126
      %p129 = scmp.ne.s32.totalorder %s112, %s128
      %p130 = scmp.eq.s32.totalorder %s29, 0
      %p131 = por %p129, %p130
      %s132 = ssub.s32 %s32, %s41
      %p133 = scmp.eq.s32.totalorder %s132, 0
      %s135 = sadd.s32 %s134, 1
      %s136 = scalar_select %p133, %s134, %s135
      %p139 = pneg %p133
      %p140 = scmp.eq.s32.totalorder %s23, 7
      %p141 = por %p139, %p140
      %p142 = scmp.ne.s32.totalorder %s134, %s137
      %p143 = scmp.eq.s32.totalorder %s23, 0
      %p144 = por %p142, %p143
      %p145 = scmp.ne.s32.totalorder %s134, %s137
      %p146 = scmp.eq.s32.totalorder %s28, 7
      %p147 = por %p145, %p146
      %p148 = scmp.ne.s32.totalorder %s137, %s138
      %p149 = scmp.eq.s32.totalorder %s28, 0
      %p150 = por %p148, %p149
      %p151 = scmp.ne.s32.totalorder %s137, %s138
      %p152 = scmp.eq.s32.totalorder %s29, 7
      %p153 = por %p151, %p152
      %p155 = scmp.ne.s32.totalorder %s138, %s154
      %p156 = scmp.eq.s32.totalorder %s29, 0
      %p157 = por %p155, %p156
      %s158 = ssub.s32 %s31, %s45
      %p159 = scmp.eq.s32.totalorder %s158, 0
      %s161 = sadd.s32 %s160, 1
      %s162 = scalar_select %p159, %s160, %s161
      %p165 = pneg %p159
      %p166 = scmp.eq.s32.totalorder %s23, 7
      %p167 = por %p165, %p166
      %p168 = scmp.ne.s32.totalorder %s160, %s163
      %p169 = scmp.eq.s32.totalorder %s23, 0
      %p170 = por %p168, %p169
      %p171 = scmp.ne.s32.totalorder %s160, %s163
      %p172 = scmp.eq.s32.totalorder %s28, 7
      %p173 = por %p171, %p172
      %p174 = scmp.ne.s32.totalorder %s163, %s164
      %p175 = scmp.eq.s32.totalorder %s28, 0
      %p176 = por %p174, %p175
      %p177 = scmp.ne.s32.totalorder %s163, %s164
      %p178 = scmp.eq.s32.totalorder %s29, 7
      %p179 = por %p177, %p178
      %p181 = scmp.ne.s32.totalorder %s164, %s180
      %p182 = scmp.eq.s32.totalorder %s29, 0
      %p183 = por %p181, %p182
      %s184 = ssub.s32 %s30, %s49
      %s185 = ssub.s32 %s31, %s45
      %s186 = sor.u32 %s184, %s185
      %p187 = scmp.eq.s32.totalorder %s186, 0
      %s189 = sadd.s32 %s188, 1
      %s190 = scalar_select %p187, %s188, %s189
      %p193 = pneg %p187
      %p194 = scmp.eq.s32.totalorder %s23, 7
      %p195 = por %p193, %p194
      %p196 = scmp.ne.s32.totalorder %s188, %s191
      %p197 = scmp.eq.s32.totalorder %s23, 0
      %p198 = por %p196, %p197
      %p199 = scmp.ne.s32.totalorder %s188, %s191
      %p200 = scmp.eq.s32.totalorder %s28, 7
      %p201 = por %p199, %p200
      %p202 = scmp.ne.s32.totalorder %s191, %s192
      %p203 = scmp.eq.s32.totalorder %s28, 0
      %p204 = por %p202, %p203
      %p205 = scmp.ne.s32.totalorder %s191, %s192
      %p206 = scmp.eq.s32.totalorder %s29, 7
      %p207 = por %p205, %p206
      %p209 = scmp.ne.s32.totalorder %s192, %s208
      %p210 = scmp.eq.s32.totalorder %s29, 0
      %p211 = por %p209, %p210
      %p212 = scmp.le.s32.totalorder 1, %s23
      %p213 = scmp.lt.s32.totalorder %s23, 9
      %p214 = pnand %p212, %p213
      %p215 = pneg %p214
      // Predicated region
      $region9: #{tpu_custom_call.1} parent=5 // pred_check
        _
      $region10: #{tpu_custom_call.1} parent=5 // pred_check_branch
        %217 = sbr.rel (%p214) target = $region12
      $region11: #{tpu_custom_call.1} parent=5 // pred_region
        %s218 = ssub.s32 %s23, 1
      $region12: #{tpu_custom_call.1} parent=5 // pred_fallthru
        _
      %p219 = scmp.lt.s32.totalorder %s23, 8
      // Predicated region
      $region13: #{tpu_custom_call.1} parent=5 // pred_check
        %p220 = pneg %p219
      $region14: #{tpu_custom_call.1} parent=5 // pred_check_branch
        %222 = sbr.rel (%p220) target = $region16
      $region15: #{tpu_custom_call.1} parent=5 // pred_region
        // Predicated region
        $region17: #{tpu_custom_call.1} parent=15 // pred_check
          %p223 = pneg %p64
        $region18: #{tpu_custom_call.1} parent=15 // pred_check_branch
          %225 = sbr.rel (%p223) target = $region20
        $region19: #{tpu_custom_call.1} parent=15 // pred_region
          %s226 = sand.u32 %s54, 1
          %s227 = scalar_lea.sflag [#allocation5], %s226
          %s228 = sand.u32 %s54, 1
          %s229 = smul.addr %s228, 4
          %s230 = scalar_lea.vmem [#allocation4], %s229
          %s232 = ssub.s32 64, 64
          %233 = vsyncadd %s227, %s232
          %s234 = smul.addr %s30, 2
          %s235 = sadd.s32 %s32, %s234
          %s236 = smul.addr %s235, 64
          %s237 = scalar_lea.hbm %s0, %s236
          %s239 = sshll.u32 %s230, 4
          %s240 = int_to_ptr.vmem [resolvable:$true] %s239
          %242 = dma.hbm_to_vmem [thread:$0]  %s237, 64, %s240, %s227
        $region20: #{tpu_custom_call.1} parent=15 // pred_fallthru
          _
        // Predicated region
        $region21: #{tpu_custom_call.1} parent=15 // pred_check
          %p243 = pneg %p92
        $region22: #{tpu_custom_call.1} parent=15 // pred_check_branch
          %245 = sbr.rel (%p243) target = $region24
        $region23: #{tpu_custom_call.1} parent=15 // pred_region
          %s246 = sand.u32 %s23, 1
          %s247 = scalar_lea.sflag [#allocation8], %s246
          %s248 = sand.u32 %s82, 1
          %s249 = smul.addr %s248, 64
          %s250 = scalar_lea.vmem [#allocation7], %s249
          %s251 = smul.u32 16, %s31
          %s253 = ssub.s32 1024, 1024
          %254 = vsyncadd %s247, %s253
          %s255 = smul.addr %s251, 2
          %s256 = sadd.s32 %s32, %s255
          %s257 = smul.addr %s256, 64
          %s258 = scalar_lea.hbm %s1, %s257
          %s259 = sshll.u32 %s250, 4
          %s260 = int_to_ptr.vmem [resolvable:$true] %s259
          %265 = dma.hbm_to_vmem [thread:$0]  %s258, 1024, %s260, %s247, 128, 64, 4
        $region24: #{tpu_custom_call.1} parent=15 // pred_fallthru
          _
        // Predicated region
        $region25: #{tpu_custom_call.1} parent=15 // pred_check
          %p266 = pneg %p118
        $region26: #{tpu_custom_call.1} parent=15 // pred_check_branch
          %268 = sbr.rel (%p266) target = $region28
        $region27: #{tpu_custom_call.1} parent=15 // pred_region
          %p269 = scmp.lt.s32.totalorder %s31, 1
          %s270 = scalar_select %p269, %s31, 1
          %s271 = scalar_lea.vmem %s2, %s270
        $region28: #{tpu_custom_call.1} parent=15 // pred_fallthru
          _
        // Predicated region
        $region29: #{tpu_custom_call.1} parent=15 // pred_check
          %p272 = pneg %p144
        $region30: #{tpu_custom_call.1} parent=15 // pred_check_branch
          %274 = sbr.rel (%p272) target = $region32
        $region31: #{tpu_custom_call.1} parent=15 // pred_region
          %s275 = sand.u32 %s23, 1
          %s276 = scalar_lea.sflag [#allocation8], %s275
          %s277 = sand.u32 %s134, 1
          %s278 = smul.addr %s277, 64
          %s279 = scalar_lea.vmem [#allocation9], %s278
          %s281 = ssub.s32 1024, 1024
          %282 = vsyncadd %s276, %s281
          %s283 = smul.addr %s32, 64
          %s284 = scalar_lea.hbm %s3, %s283
          %s285 = sshll.u32 %s279, 4
          %s286 = int_to_ptr.vmem [resolvable:$true] %s285
          %291 = dma.hbm_to_vmem [thread:$0]  %s284, 1024, %s286, %s276, 128, 64, 4
        $region32: #{tpu_custom_call.1} parent=15 // pred_fallthru
          _
        // Predicated region
        $region33: #{tpu_custom_call.1} parent=15 // pred_check
          %p292 = pneg %p170
        $region34: #{tpu_custom_call.1} parent=15 // pred_check_branch
          %294 = sbr.rel (%p292) target = $region36
        $region35: #{tpu_custom_call.1} parent=15 // pred_region
          %s295 = sand.u32 %s160, 1
          %s296 = scalar_lea.sflag [#allocation11], %s295
          %s297 = sand.u32 %s160, 1
          %s298 = smul.addr %s297, 64
          %s299 = scalar_lea.vmem [#allocation10], %s298
          %s300 = smul.u32 16, %s31
          %s302 = ssub.s32 1024, 1024
          %303 = vsyncadd %s296, %s302
          %s304 = smul.addr %s300, 64
          %s305 = scalar_lea.hbm %s4, %s304
          %s306 = sshll.u32 %s299, 4
          %s307 = int_to_ptr.vmem [resolvable:$true] %s306
          %312 = dma.hbm_to_vmem [thread:$0]  %s305, 1024, %s307, %s296, 64, 64, 4
        $region36: #{tpu_custom_call.1} parent=15 // pred_fallthru
          _
      $region16: #{tpu_custom_call.1} parent=5 // pred_fallthru
        _
      %p313 = scmp.le.s32.totalorder 1, %s23
      %p314 = scmp.lt.s32.totalorder %s23, 9
      %p315 = pnand %p313, %p314
      %p316 = pneg %p315
      // Predicated region
      $region37: #{tpu_custom_call.1} parent=5 // pred_check
        _
      $region38: #{tpu_custom_call.1} parent=5 // pred_check_branch
        %318 = sbr.rel (%p315) target = $region40
      $region39: #{tpu_custom_call.1} parent=5 // pred_region
        %s319 = ssub.s32 %s23, 1
        %s320 = sand.u32 %s57, 1
        %s321 = scalar_lea.sflag [#allocation5], %s320
        %s322 = sand.u32 %s57, 1
        %s323 = smul.addr %s322, 4
        %s324 = scalar_lea.vmem [#allocation4], %s323
        // Predicated region
        $region41: #{tpu_custom_call.1} parent=39 // pred_check
          %p325 = pneg %p70
        $region42: #{tpu_custom_call.1} parent=39 // pred_check_branch
          %327 = sbr.rel (%p325) target = $region44
        $region43: #{tpu_custom_call.1} parent=39 // pred_region
          %328 = dma.done %s321, 64
        $region44: #{tpu_custom_call.1} parent=39 // pred_fallthru
          _
        %s329 = sand.u32 %s28, 1
        %s330 = scalar_lea.sflag [#allocation8], %s329
        %s331 = sand.u32 %s85, 1
        %s332 = smul.addr %s331, 64
        %s333 = scalar_lea.vmem [#allocation7], %s332
        // Predicated region
        $region45: #{tpu_custom_call.1} parent=39 // pred_check
          %p334 = pneg %p98
        $region46: #{tpu_custom_call.1} parent=39 // pred_check_branch
          %336 = sbr.rel (%p334) target = $region48
        $region47: #{tpu_custom_call.1} parent=39 // pred_region
          %337 = dma.done %s330, 1024
        $region48: #{tpu_custom_call.1} parent=39 // pred_fallthru
          _
        %s338 = sand.u32 %s28, 1
        %s339 = scalar_lea.sflag [#allocation8], %s338
        %s340 = sand.u32 %s137, 1
        %s341 = smul.addr %s340, 64
        %s342 = scalar_lea.vmem [#allocation9], %s341
        // Predicated region
        $region49: #{tpu_custom_call.1} parent=39 // pred_check
          %p343 = pneg %p150
        $region50: #{tpu_custom_call.1} parent=39 // pred_check_branch
          %345 = sbr.rel (%p343) target = $region52
        $region51: #{tpu_custom_call.1} parent=39 // pred_region
          %346 = dma.done %s339, 1024
        $region52: #{tpu_custom_call.1} parent=39 // pred_fallthru
          _
        %s347 = sand.u32 %s163, 1
        %s348 = scalar_lea.sflag [#allocation11], %s347
        %s349 = sand.u32 %s163, 1
        %s350 = smul.addr %s349, 64
        %s351 = scalar_lea.vmem [#allocation10], %s350
        // Predicated region
        $region53: #{tpu_custom_call.1} parent=39 // pred_check
          %p352 = pneg %p176
        $region54: #{tpu_custom_call.1} parent=39 // pred_check_branch
          %354 = sbr.rel (%p352) target = $region56
        $region55: #{tpu_custom_call.1} parent=39 // pred_region
          %355 = dma.done %s348, 1024
        $region56: #{tpu_custom_call.1} parent=39 // pred_fallthru
          _
        %s356 = sand.u32 %s57, 1
        %s357 = scalar_lea.sflag [#allocation5], %s356
        %s358 = sand.u32 %s57, 1
        %s359 = smul.addr %s358, 4
        %s360 = scalar_lea.vmem [#allocation4], %s359
        %p361 = pneg %p70
        %p362 = pneg %p67
        %s363 = sand.u32 %s28, 1
        %s364 = scalar_lea.sflag [#allocation8], %s363
        %s365 = sand.u32 %s85, 1
        %s366 = smul.addr %s365, 64
        %s367 = scalar_lea.vmem [#allocation7], %s366
        %p368 = pneg %p98
        %p369 = pneg %p95
        %p370 = scmp.lt.s32.totalorder %s34, 1
        %s371 = scalar_select %p370, %s34, 1
        %s372 = scalar_lea.vmem %s2, %s371
        %p373 = pneg %p124
        %p374 = pneg %p121
        %s375 = sand.u32 %s28, 1
        %s376 = scalar_lea.sflag [#allocation8], %s375
        %s377 = sand.u32 %s137, 1
        %s378 = smul.addr %s377, 64
        %s379 = scalar_lea.vmem [#allocation9], %s378
        %p380 = pneg %p150
        %p381 = pneg %p147
        %s382 = sand.u32 %s163, 1
        %s383 = scalar_lea.sflag [#allocation11], %s382
        %s384 = sand.u32 %s163, 1
        %s385 = smul.addr %s384, 64
        %s386 = scalar_lea.vmem [#allocation10], %s385
        %p387 = pneg %p176
        %p388 = pneg %p173
        %p389 = pneg %p204
        %p390 = pneg %p201
        %s391 = sand.u32 %s191, 1
        %s392 = scalar_lea.sflag [#allocation6], %s391
        %s393 = sand.u32 %s191, 1
        %s394 = smul.addr %s393, 8
        %s395 = scalar_lea.vmem [#allocation12], %s394
        %s396 = smul.u32 16, %s34
        %p397 = scmp.lt.s32.totalorder %s34, 1
        %s398 = scalar_select %p397, %s34, 1
        %s399 = scalar_lea.vmem %s2, %s398
        %s400 = smul.u32 16, %s34
        %p402 = scmp.eq.s32.totalorder %s35, 0
        // Predicated region
        $region57: #{tpu_custom_call.1} parent=39 // pred_check
          %p403 = pneg %p402
        $region58: #{tpu_custom_call.1} parent=39 // pred_check_branch
          %405 = sbr.rel (%p403) target = $region60
        $region59: #{tpu_custom_call.1} parent=39 // pred_region
          %406 = vst [vmem:[#allocation2] sm:$0xff] 0.0
          %407 = vst [vmem:[#allocation3] sm:$0xff] 0.0
        $region60: #{tpu_custom_call.1} parent=39 // pred_fallthru
          _
        %v408 = vld [vmem:[%s324] sm:$0xf]
        %v409 = vld [vmem:[#allocation2] sm:$0xff]
        %v410 = vld [vmem:[%s333] sm:$0xf]
        %v411 = vld [vmem:[%s333 + $0x4] sm:$0xf]
        %v412 = vld [vmem:[%s333 + $0x8] sm:$0xf]
        %v413 = vld [vmem:[%s333 + $0xc] sm:$0xf]
        %v414 = vld [vmem:[%s333 + $0x10] sm:$0xf]
        %v415 = vld [vmem:[%s333 + $0x14] sm:$0xf]
        %v416 = vld [vmem:[%s333 + $0x18] sm:$0xf]
        %v417 = vld [vmem:[%s333 + $0x1c] sm:$0xf]
        %v418 = vld [vmem:[%s333 + $0x20] sm:$0xf]
        %v419 = vld [vmem:[%s333 + $0x24] sm:$0xf]
        %v420 = vld [vmem:[%s333 + $0x28] sm:$0xf]
        %v421 = vld [vmem:[%s333 + $0x2c] sm:$0xf]
        %v422 = vld [vmem:[%s333 + $0x30] sm:$0xf]
        %v423 = vld [vmem:[%s333 + $0x34] sm:$0xf]
        %v424 = vld [vmem:[%s333 + $0x38] sm:$0xf]
        %v425 = vld [vmem:[%s333 + $0x3c] sm:$0xf]
        %v442 = vunpack.c.l.b16 %v410
        %v443 = vunpack.c.l.b16 %v411
        %v444 = vunpack.c.l.b16 %v412
        %v445 = vunpack.c.l.b16 %v413
        %v446 = vunpack.c.l.b16 %v414
        %v447 = vunpack.c.l.b16 %v415
        %v448 = vunpack.c.l.b16 %v416
        %v449 = vunpack.c.l.b16 %v417
        %v450 = vunpack.c.l.b16 %v418
        %v451 = vunpack.c.l.b16 %v419
        %v452 = vunpack.c.l.b16 %v420
        %v453 = vunpack.c.l.b16 %v421
        %v454 = vunpack.c.l.b16 %v422
        %v455 = vunpack.c.l.b16 %v423
        %v456 = vunpack.c.l.b16 %v424
        %v457 = vunpack.c.l.b16 %v425
        %v458 = vpack.c.b16 %v443, %v442
        %v459 = vpack.c.b16 %v445, %v444
        %v460 = vpack.c.b16 %v447, %v446
        %v461 = vpack.c.b16 %v449, %v448
        %v462 = vpack.c.b16 %v451, %v450
        %v463 = vpack.c.b16 %v453, %v452
        %v464 = vpack.c.b16 %v455, %v454
        %v465 = vpack.c.b16 %v457, %v456
        %474 = vmatprep.subr.bf16.mxu0 0
        %475 = vmatpush1.bf16.xpose.msra.mxu0 %v465
        %476 = vmatprep.subr.bf16.mxu0 0
        %477 = vmatpush1.bf16.xpose.msra.mxu0 %v464
        %478 = vmatprep.subr.bf16.mxu0 0
        %479 = vmatpush1.bf16.xpose.msra.mxu0 %v463
        %480 = vmatprep.subr.bf16.mxu0 0
        %481 = vmatpush1.bf16.xpose.msra.mxu0 %v462
        %482 = vmatprep.subr.bf16.mxu0 0
        %483 = vmatpush1.bf16.xpose.msra.mxu0 %v461
        %484 = vmatprep.subr.bf16.mxu0 0
        %485 = vmatpush1.bf16.xpose.msra.mxu0 %v460
        %486 = vmatprep.subr.bf16.mxu0 0
        %487 = vmatpush1.bf16.xpose.msra.mxu0 %v459
        %488 = vmatprep.subr.bf16.mxu0 0
        %489 = vmatpush1.bf16.xpose.msra.mxu0 %v458
        %490 = vmatprep.subr.bf16.mxu0 0
        %491 = vmatpush2.bf16.xpose.msra.mxu0 0
        %492 = vmatprep.subr.bf16.mxu0 0
        %493 = vmatpush2.bf16.xpose.msra.mxu0 0
        %494 = vmatprep.subr.bf16.mxu0 0
        %495 = vmatpush2.bf16.xpose.msra.mxu0 0
        %496 = vmatprep.subr.bf16.mxu0 0
        %497 = vmatpush2.bf16.xpose.msra.mxu0 0
        %498 = vmatprep.subr.bf16.mxu0 0
        %499 = vmatpush2.bf16.xpose.msra.mxu0 0
        %500 = vmatprep.subr.bf16.mxu0 0
        %501 = vmatpush2.bf16.xpose.msra.mxu0 0
        %502 = vmatprep.subr.bf16.mxu0 0
        %503 = vmatpush2.bf16.xpose.msra.mxu0 0
        %504 = vmatprep.subr.bf16.mxu0 0
        %505 = vmatpush2.bf16.xpose.msra.mxu0 0
        %506 = vmatprep.mubr.bf16.mxu0 0
        %507 = vmatmul.mubr.bf16.gmra.mxu0 %v408
        %v508 = vpop.f32.mrf.mxu0
        %v509 = vadd.f32 0.0, %v508
        %v510 = vpop.f32.mrf.mxu0
        %v511 = vpop.f32.mrf.mxu0
        %v512 = vpop.f32.mrf.mxu0
        %513 = vdwg.mxu0
        %v514 = vadd.f32 %v409, %v509
        %515 = vst [vmem:[#allocation2] sm:$0xff] %v514
        %v516 = vld [vmem:[#allocation3] sm:$0xff]
        %v517 = vld [vmem:[%s342] sm:$0xf]
        %v518 = vld [vmem:[%s342 + $0x4] sm:$0xf]
        %v519 = vld [vmem:[%s342 + $0x8] sm:$0xf]
        %v520 = vld [vmem:[%s342 + $0xc] sm:$0xf]
        %v521 = vld [vmem:[%s342 + $0x10] sm:$0xf]
        %v522 = vld [vmem:[%s342 + $0x14] sm:$0xf]
        %v523 = vld [vmem:[%s342 + $0x18] sm:$0xf]
        %v524 = vld [vmem:[%s342 + $0x1c] sm:$0xf]
        %v525 = vld [vmem:[%s342 + $0x20] sm:$0xf]
        %v526 = vld [vmem:[%s342 + $0x24] sm:$0xf]
        %v527 = vld [vmem:[%s342 + $0x28] sm:$0xf]
        %v528 = vld [vmem:[%s342 + $0x2c] sm:$0xf]
        %v529 = vld [vmem:[%s342 + $0x30] sm:$0xf]
        %v530 = vld [vmem:[%s342 + $0x34] sm:$0xf]
        %v531 = vld [vmem:[%s342 + $0x38] sm:$0xf]
        %v532 = vld [vmem:[%s342 + $0x3c] sm:$0xf]
        %v549 = vunpack.c.l.b16 %v517
        %v550 = vunpack.c.l.b16 %v518
        %v551 = vunpack.c.l.b16 %v519
        %v552 = vunpack.c.l.b16 %v520
        %v553 = vunpack.c.l.b16 %v521
        %v554 = vunpack.c.l.b16 %v522
        %v555 = vunpack.c.l.b16 %v523
        %v556 = vunpack.c.l.b16 %v524
        %v557 = vunpack.c.l.b16 %v525
        %v558 = vunpack.c.l.b16 %v526
        %v559 = vunpack.c.l.b16 %v527
        %v560 = vunpack.c.l.b16 %v528
        %v561 = vunpack.c.l.b16 %v529
        %v562 = vunpack.c.l.b16 %v530
        %v563 = vunpack.c.l.b16 %v531
        %v564 = vunpack.c.l.b16 %v532
        %v565 = vpack.c.b16 %v550, %v549
        %v566 = vpack.c.b16 %v552, %v551
        %v567 = vpack.c.b16 %v554, %v553
        %v568 = vpack.c.b16 %v556, %v555
        %v569 = vpack.c.b16 %v558, %v557
        %v570 = vpack.c.b16 %v560, %v559
        %v571 = vpack.c.b16 %v562, %v561
        %v572 = vpack.c.b16 %v564, %v563
        %581 = vmatprep.subr.bf16.mxu0 0
        %582 = vmatpush1.bf16.xpose.msra.mxu0 %v572
        %583 = vmatprep.subr.bf16.mxu0 0
        %584 = vmatpush1.bf16.xpose.msra.mxu0 %v571
        %585 = vmatprep.subr.bf16.mxu0 0
        %586 = vmatpush1.bf16.xpose.msra.mxu0 %v570
        %587 = vmatprep.subr.bf16.mxu0 0
        %588 = vmatpush1.bf16.xpose.msra.mxu0 %v569
        %589 = vmatprep.subr.bf16.mxu0 0
        %590 = vmatpush1.bf16.xpose.msra.mxu0 %v568
        %591 = vmatprep.subr.bf16.mxu0 0
        %592 = vmatpush1.bf16.xpose.msra.mxu0 %v567
        %593 = vmatprep.subr.bf16.mxu0 0
        %594 = vmatpush1.bf16.xpose.msra.mxu0 %v566
        %595 = vmatprep.subr.bf16.mxu0 0
        %596 = vmatpush1.bf16.xpose.msra.mxu0 %v565
        %597 = vmatprep.subr.bf16.mxu0 0
        %598 = vmatpush2.bf16.xpose.msra.mxu0 0
        %599 = vmatprep.subr.bf16.mxu0 0
        %600 = vmatpush2.bf16.xpose.msra.mxu0 0
        %601 = vmatprep.subr.bf16.mxu0 0
        %602 = vmatpush2.bf16.xpose.msra.mxu0 0
        %603 = vmatprep.subr.bf16.mxu0 0
        %604 = vmatpush2.bf16.xpose.msra.mxu0 0
        %605 = vmatprep.subr.bf16.mxu0 0
        %606 = vmatpush2.bf16.xpose.msra.mxu0 0
        %607 = vmatprep.subr.bf16.mxu0 0
        %608 = vmatpush2.bf16.xpose.msra.mxu0 0
        %609 = vmatprep.subr.bf16.mxu0 0
        %610 = vmatpush2.bf16.xpose.msra.mxu0 0
        %611 = vmatprep.subr.bf16.mxu0 0
        %612 = vmatpush2.bf16.xpose.msra.mxu0 0
        %613 = vmatprep.mubr.bf16.mxu0 0
        %614 = vmatmul.mubr.bf16.gmra.mxu0 %v408
        %v615 = vpop.f32.mrf.mxu0
        %v616 = vadd.f32 0.0, %v615
        %v617 = vpop.f32.mrf.mxu0
        %v618 = vpop.f32.mrf.mxu0
        %v619 = vpop.f32.mrf.mxu0
        %620 = vdwg.mxu0
        %v621 = vadd.f32 %v516, %v616
        %622 = vst [vmem:[#allocation3] sm:$0xff] %v621
        %p623 = scmp.eq.s32.totalorder %s35, 1
        // Predicated region
        $region61: #{tpu_custom_call.1} parent=39 // pred_check
          %p624 = pneg %p623
        $region62: #{tpu_custom_call.1} parent=39 // pred_check_branch
          %626 = sbr.rel (%p624) target = $region64
        $region63: #{tpu_custom_call.1} parent=39 // pred_region
          %v627 = vld [vmem:[#allocation3] sm:$0xff]
          %v628 = vmul.f32 %v627, 0.25
          %v629 = vpack.c.bf16 %v628, %v628
          %v630 = vld [vmem:[%s351] sm:$0xf]
          %v631 = vld [vmem:[%s351 + $0x4] sm:$0xf]
          %v632 = vld [vmem:[%s351 + $0x8] sm:$0xf]
          %v633 = vld [vmem:[%s351 + $0xc] sm:$0xf]
          %v634 = vld [vmem:[%s351 + $0x10] sm:$0xf]
          %v635 = vld [vmem:[%s351 + $0x14] sm:$0xf]
          %v636 = vld [vmem:[%s351 + $0x18] sm:$0xf]
          %v637 = vld [vmem:[%s351 + $0x1c] sm:$0xf]
          %v638 = vld [vmem:[%s351 + $0x20] sm:$0xf]
          %v639 = vld [vmem:[%s351 + $0x24] sm:$0xf]
          %v640 = vld [vmem:[%s351 + $0x28] sm:$0xf]
          %v641 = vld [vmem:[%s351 + $0x2c] sm:$0xf]
          %v642 = vld [vmem:[%s351 + $0x30] sm:$0xf]
          %v643 = vld [vmem:[%s351 + $0x34] sm:$0xf]
          %v644 = vld [vmem:[%s351 + $0x38] sm:$0xf]
          %v645 = vld [vmem:[%s351 + $0x3c] sm:$0xf]
          %v662 = vunpack.c.l.b16 %v630
          %v663 = vunpack.c.l.b16 %v631
          %v664 = vunpack.c.l.b16 %v632
          %v665 = vunpack.c.l.b16 %v633
          %v666 = vunpack.c.l.b16 %v634
          %v667 = vunpack.c.l.b16 %v635
          %v668 = vunpack.c.l.b16 %v636
          %v669 = vunpack.c.l.b16 %v637
          %v670 = vunpack.c.l.b16 %v638
          %v671 = vunpack.c.l.b16 %v639
          %v672 = vunpack.c.l.b16 %v640
          %v673 = vunpack.c.l.b16 %v641
          %v674 = vunpack.c.l.b16 %v642
          %v675 = vunpack.c.l.b16 %v643
          %v676 = vunpack.c.l.b16 %v644
          %v677 = vunpack.c.l.b16 %v645
          %v678 = vpack.c.b16 %v663, %v662
          %v679 = vpack.c.b16 %v665, %v664
          %v680 = vpack.c.b16 %v667, %v666
          %v681 = vpack.c.b16 %v669, %v668
          %v682 = vpack.c.b16 %v671, %v670
          %v683 = vpack.c.b16 %v673, %v672
          %v684 = vpack.c.b16 %v675, %v674
          %v685 = vpack.c.b16 %v677, %v676
          %694 = vmatprep.subr.bf16.mxu0 0
          %695 = vmatpush1.bf16.xpose.msra.mxu0 %v685
          %696 = vmatprep.subr.bf16.mxu0 0
          %697 = vmatpush1.bf16.xpose.msra.mxu0 %v684
          %698 = vmatprep.subr.bf16.mxu0 0
          %699 = vmatpush1.bf16.xpose.msra.mxu0 %v683
          %700 = vmatprep.subr.bf16.mxu0 0
          %701 = vmatpush1.bf16.xpose.msra.mxu0 %v682
          %702 = vmatprep.subr.bf16.mxu0 0
          %703 = vmatpush1.bf16.xpose.msra.mxu0 %v681
          %704 = vmatprep.subr.bf16.mxu0 0
          %705 = vmatpush1.bf16.xpose.msra.mxu0 %v680
          %706 = vmatprep.subr.bf16.mxu0 0
          %707 = vmatpush1.bf16.xpose.msra.mxu0 %v679
          %708 = vmatprep.subr.bf16.mxu0 0
          %709 = vmatpush1.bf16.xpose.msra.mxu0 %v678
          %710 = vmatprep.subr.bf16.mxu0 0
          %711 = vmatpush2.bf16.xpose.msra.mxu0 0
          %712 = vmatprep.subr.bf16.mxu0 0
          %713 = vmatpush2.bf16.xpose.msra.mxu0 0
          %714 = vmatprep.subr.bf16.mxu0 0
          %715 = vmatpush2.bf16.xpose.msra.mxu0 0
          %716 = vmatprep.subr.bf16.mxu0 0
          %717 = vmatpush2.bf16.xpose.msra.mxu0 0
          %718 = vmatprep.subr.bf16.mxu0 0
          %719 = vmatpush2.bf16.xpose.msra.mxu0 0
          %720 = vmatprep.subr.bf16.mxu0 0
          %721 = vmatpush2.bf16.xpose.msra.mxu0 0
          %722 = vmatprep.subr.bf16.mxu0 0
          %723 = vmatpush2.bf16.xpose.msra.mxu0 0
          %724 = vmatprep.subr.bf16.mxu0 0
          %725 = vmatpush2.bf16.xpose.msra.mxu0 0
          %726 = vmatprep.mubr.bf16.mxu0 0
          %727 = vmatmul.mubr.bf16.gmra.mxu0 %v629
          %v728 = vpop.f32.mrf.mxu0
          %v729 = vadd.f32 0.0, %v728
          %v730 = vpop.f32.mrf.mxu0
          %v731 = vpop.f32.mrf.mxu0
          %v732 = vpop.f32.mrf.mxu0
          %733 = vdwg.mxu0
          %v734 = vld [vmem:[#allocation2] sm:$0xff]
          %v735 = vld [vmem:[%s399] sm:$0x1]
          %v737 = vlaneseq
          %v738 = vshrl.u32 %v737, 7
          %v739 = vsub.s32 0, %v738
          %v740 = vrot.slane %v735, %v739
          %v742 = vadd.f32 %v734, %v740
          %v743 = vadd.f32 %v742, %v729
          %744 = vst [vmem:[%s395] sm:$0xff] %v743
        $region64: #{tpu_custom_call.1} parent=39 // pred_fallthru
          _
        %s745 = sand.u32 %s191, 1
        %s746 = scalar_lea.sflag [#allocation6], %s745
        %s747 = sand.u32 %s191, 1
        %s748 = smul.addr %s747, 8
        %s749 = scalar_lea.vmem [#allocation12], %s748
        // Predicated region
        $region65: #{tpu_custom_call.1} parent=39 // pred_check
          %p750 = pneg %p201
        $region66: #{tpu_custom_call.1} parent=39 // pred_check_branch
          %752 = sbr.rel (%p750) target = $region68
        $region67: #{tpu_custom_call.1} parent=39 // pred_region
          %s754 = ssub.s32 128, 128
          %755 = vsyncadd %s746, %s754
          %s756 = smul.addr %s33, 2
          %s757 = sadd.s32 %s34, %s756
          %s758 = smul.addr %s757, 128
          %s759 = scalar_lea.hbm %s5, %s758
          %s761 = sshll.u32 %s749, 4
          %s762 = int_to_ptr.vmem [resolvable:$true] %s761
          %764 = dma.vmem_to_hbm [thread:$0]  %s762, 128, %s759, %s746
        $region68: #{tpu_custom_call.1} parent=39 // pred_fallthru
          _
      $region40: #{tpu_custom_call.1} parent=5 // pred_fallthru
        _
      %p765 = scmp.le.s32.totalorder 2, %s23
      // Predicated region
      $region69: #{tpu_custom_call.1} parent=5 // pred_check
        %p766 = pneg %p765
      $region70: #{tpu_custom_call.1} parent=5 // pred_check_branch
        %768 = sbr.rel (%p766) target = $region72
      $region71: #{tpu_custom_call.1} parent=5 // pred_region
        %s769 = ssub.s32 %s23, 2
        // Predicated region
        $region73: #{tpu_custom_call.1} parent=71 // pred_check
          %p770 = pneg %p207
        $region74: #{tpu_custom_call.1} parent=71 // pred_check_branch
          %772 = sbr.rel (%p770) target = $region76
        $region75: #{tpu_custom_call.1} parent=71 // pred_region
          %s773 = sand.u32 %s192, 1
          %s774 = scalar_lea.sflag [#allocation6], %s773
          %s775 = sand.u32 %s192, 1
          %s776 = smul.addr %s775, 8
          %s777 = scalar_lea.vmem [#allocation12], %s776
          %778 = dma.done %s774, 128
        $region76: #{tpu_custom_call.1} parent=71 // pred_fallthru
          _
      $region72: #{tpu_custom_call.1} parent=5 // pred_fallthru
        _
    $region6: #{tpu_custom_call.1} parent=1 // loop_footer
      %s27 = sadd.s32 1, %s23
    $region7: #{tpu_custom_call.1} parent=1 // loop_footer_branch
      %22 = sbr.rel target = $region3
    $region8: #{tpu_custom_call.1} parent=1 // loop_exit
      _
    %779 = vsyncpa [#allocation5], 1
    %s780 = scalar_lea.sflag [#allocation5], 1
    %781 = vsyncpa %s780, 1
    %782 = vsyncpa [#allocation8], 1
    %s783 = scalar_lea.sflag [#allocation8], 1
    %784 = vsyncpa %s783, 1
    %785 = vsyncpa [#allocation11], 1
    %s786 = scalar_lea.sflag [#allocation11], 1
    %787 = vsyncpa %s786, 1
    %788 = vsyncpa [#allocation6], 1
    %s789 = scalar_lea.sflag [#allocation6], 1
    %790 = vsyncpa %s789, 1

</llo_original>
